<compile_context>
chip_gen: v6e
topology: v6e:2x2x1
jax: 0.10.0
libtpu: 0.0.40
codegen_flags: <defaults>
</compile_context>

<pallas_src>
import functools

import jax
import jax.numpy as jnp
from jax import lax
from jax.experimental import pallas as pl
from jax.experimental.pallas import tpu as pltpu

EPS = 1e-6


def _reduce_mt(op, v):
    # Per-sample reduction over the trailing (sublane, lane) axes of a (bt, R, C) block.
    return op(op(v, axis=2, keepdims=True), axis=1, keepdims=True)


# --------------------------------------------------------------------------- #
# Path 1: whole-sample blocks (common case).                                   #
# --------------------------------------------------------------------------- #
def _normalize_block_kernel(x_ref, o_ref):
    x = x_ref[...]                               # (bt, R, C), native dtype
    xf = x.astype(jnp.float32)                   # widen in-kernel only
    n = x.shape[1] * x.shape[2]

    # Shifted single-pass moments (robust for large-mean data, e.g. dB mel specs);
    # min/max are exact, std only feeds the fix threshold.
    shift = xf[:, 0:1, 0:1]
    xc = xf - shift
    s = _reduce_mt(jnp.sum, xc)                  # (bt, 1, 1)
    q = _reduce_mt(jnp.sum, xc * xc)
    xmin = _reduce_mt(jnp.min, xf)
    xmax = _reduce_mt(jnp.max, xf)

    denom = max(n - 1, 1)                        # n == 1: torch leaves V == 0; so do we
    var = jnp.maximum((q - s * s * (1.0 / n)) * (1.0 / denom), 0.0)
    std = jnp.sqrt(var)

    rng = xmax - xmin
    fix = rng > EPS * (std + EPS)                # == (mx_std - mn_std) > eps
    inv = jnp.where(fix, 1.0, 0.0) / jnp.where(fix, rng, 1.0)

    o_ref[...] = ((xf - xmin) * inv).astype(o_ref.dtype)


# --------------------------------------------------------------------------- #
# Path 2: chunked two-pass (single sample does not fit the VMEM budget).       #
# --------------------------------------------------------------------------- #
def _sample_stats_kernel(x_ref, stats_ref, c0_ref, s_ref, q_ref, mn_ref, mx_ref, *, n):
    c = pl.program_id(1)
    xf = x_ref[...].astype(jnp.float32)          # (1, Rt, C) or (1, R, Ct)

    @pl.when(c == 0)
    def _():
        c0_ref[...] = xf[0, 0:1, 0:1]            # per-sample shift for robust variance
        s_ref[...] = jnp.zeros_like(s_ref)
        q_ref[...] = jnp.zeros_like(q_ref)
        mn_ref[...] = jnp.full_like(mn_ref, jnp.inf)
        mx_ref[...] = jnp.full_like(mx_ref, -jnp.inf)

    xc = xf - c0_ref[...]
    s_ref[...] += _reduce_mt(jnp.sum, xc)[0]
    q_ref[...] += _reduce_mt(jnp.sum, xc * xc)[0]
    mn_ref[...] = jnp.minimum(mn_ref[...], _reduce_mt(jnp.min, xf)[0])
    mx_ref[...] = jnp.maximum(mx_ref[...], _reduce_mt(jnp.max, xf)[0])

    @pl.when(c == pl.num_programs(1) - 1)
    def _():
        s, q = s_ref[...], q_ref[...]
        mn, mx = mn_ref[...], mx_ref[...]
        denom = max(n - 1, 1)
        var = jnp.maximum((q - s * s * (1.0 / n)) * (1.0 / denom), 0.0)
        std = jnp.sqrt(var)
        rng = mx - mn
        fix = rng > EPS * (std + EPS)
        inv = jnp.where(fix, 1.0, 0.0) / jnp.where(fix, rng, 1.0)
        lane = lax.broadcasted_iota(jnp.int32, (1, 1, 128), 2)
        stats_ref[...] = jnp.where(lane == 0, mn.reshape(1, 1, 1),
                                   jnp.where(lane == 1, inv.reshape(1, 1, 1), 0.0))


def _apply_stats_kernel(stats_ref, x_ref, o_ref):
    xf = x_ref[...].astype(jnp.float32)
    st = stats_ref[...]                          # (1, 1, 128): lane0 = xmin, lane1 = inv
    xmin = st[0:1, 0:1, 0:1]
    inv = st[0:1, 0:1, 1:2]
    o_ref[...] = ((xf - xmin) * inv).astype(o_ref.dtype)


def _normalize_two_pass(xv, axis, chunk, vmem_limit):
    B, R, C = xv.shape
    n = R * C
    if axis == "rows":                           # contiguous-in-HBM chunks
        n_chunks = R // chunk
        x_block = (1, chunk, C)
        x_idx = lambda b, c: (b, c, 0)
    else:                                        # lane-axis chunks (128-multiples)
        n_chunks = C // chunk
        x_block = (1, R, chunk)
        x_idx = lambda b, c: (b, 0, c)

    stats = pl.pallas_call(
        functools.partial(_sample_stats_kernel, n=n),
        out_shape=jax.ShapeDtypeStruct((B, 1, 128), jnp.float32),
        grid_spec=pltpu.PrefetchScalarGridSpec(
            num_scalar_prefetch=0,
            grid=(B, n_chunks),
            in_specs=[pl.BlockSpec(x_block, x_idx)],
            out_specs=pl.BlockSpec((1, 1, 128), lambda b, c: (b, 0, 0)),
            scratch_shapes=[pltpu.VMEM((1, 1), jnp.float32)] * 5,
        ),
        compiler_params=pltpu.CompilerParams(
            dimension_semantics=("parallel", "arbitrary"),
            vmem_limit_bytes=vmem_limit,
        ),
    )(xv)

    return pl.pallas_call(
        _apply_stats_kernel,
        out_shape=jax.ShapeDtypeStruct(xv.shape, xv.dtype),
        grid_spec=pltpu.PrefetchScalarGridSpec(
            num_scalar_prefetch=0,
            grid=(B, n_chunks),
            in_specs=[pl.BlockSpec((1, 1, 128), lambda b, c: (b, 0, 0)),
                      pl.BlockSpec(x_block, x_idx)],
            out_specs=pl.BlockSpec(x_block, x_idx),
        ),
        compiler_params=pltpu.CompilerParams(
            dimension_semantics=("parallel", "arbitrary"),
            vmem_limit_bytes=vmem_limit,
        ),
    )(stats, xv)


# --------------------------------------------------------------------------- #
# Wrapper: layout, tiling, VMEM budgeting.                                     #
# --------------------------------------------------------------------------- #
def _device_vmem_budget_bytes():
    try:
        cap = int(pltpu.get_tpu_info().vmem_capacity_bytes)   # 64 MiB/TC on v7x
    except Exception:
        cap = 64 << 20                                        # conservative fallback
    return max(min(cap, 128 << 20) - (8 << 20), 32 << 20)


def _lane_dense_view(x):
    """Free row-major regroup to a lane-dense per-sample 3-D view."""
    B, M, T = x.shape
    N = M * T
    if T % 128 == 0:
        return x                                 # already lane-dense
    if N % 128 == 0:
        return x.reshape(B, N // 128, 128)       # unmasked 128-lane stores
    # TODO(synk): M*T not divisible by 128 — keep natural layout; tail stores are masked.
    return x


def _pick_batch_tile(B, per_sample_bytes, target_block_bytes):
    divisors = [d for d in range(1, B + 1) if B % d == 0]
    cap_bytes = max(target_block_bytes, per_sample_bytes)
    bt = max(d for d in divisors if d * per_sample_bytes <= cap_bytes)
    # Keep >= min(B, 4) grid steps alive: pipelining + v7x dual-TC sharding.
    step_cap = max(1, B // min(B, 4))
    return min(bt, max(d for d in divisors if d <= step_cap))


def _find_sample_chunk(R, C, itemsize, target_block_bytes):
    """Exact-divisor chunking of one (R, C) sample (no garbage enters the reduce)."""
    sub = {4: 8, 2: 16, 1: 32}.get(itemsize, 8)
    r_max = target_block_bytes // max(C * itemsize, 1)
    rows = [r for r in range(sub, min(R, r_max) + 1, sub) if R % r == 0]
    if rows and R // max(rows) >= 2:
        return ("rows", max(rows))
    if C % 128 == 0:
        c_max = target_block_bytes // max(R * itemsize, 1)
        cols = [c for c in range(128, min(C, c_max) + 1, 128) if C % c == 0]
        if cols and C // max(cols) >= 2:
            return ("cols", max(cols))
    return None


def normalize_mel_spec(x, *, target_block_bytes=4 * 1024 * 1024, force_two_pass=False):
    """x: (B, M, T) float array. Returns the normalized array, same shape/dtype."""
    B, M, T = x.shape
    xv = _lane_dense_view(x)
    Bv, R, C = xv.shape
    itemsize = jnp.dtype(x.dtype).itemsize
    per_sample = R * C * itemsize
    per_sample_f32 = R * C * 4
    budget = _device_vmem_budget_bytes()

    # Whole-sample path: in+out double-buffered (native dtype) + ~3 f32 block temps.
    need_bt1 = 4 * per_sample + 3 * per_sample_f32 + (2 << 20)
    two_pass = force_two_pass or need_bt1 > budget
    plan = _find_sample_chunk(R, C, itemsize, target_block_bytes) if two_pass else None
    if two_pass and plan is None:
        two_pass = False  # TODO(synk): huge ragged sample with no clean chunking.

    if two_pass:
        axis, chunk = plan
        chunk_elems = chunk * C if axis == "rows" else R * chunk
        vmem_needed = 4 * chunk_elems * itemsize + 3 * chunk_elems * 4 + (2 << 20)
        out_v = _normalize_two_pass(xv, axis, chunk,
                                    int(min(max(vmem_needed, 32 << 20), budget)))
    else:
        bt = _pick_batch_tile(Bv, per_sample, target_block_bytes)
        vmem_needed = 4 * bt * per_sample + 3 * bt * per_sample_f32 + (2 << 20)
        out_v = pl.pallas_call(
            _normalize_block_kernel,
            out_shape=jax.ShapeDtypeStruct((Bv, R, C), x.dtype),
            grid_spec=pltpu.PrefetchScalarGridSpec(
                num_scalar_prefetch=0,
                grid=(Bv // bt,),
                in_specs=[pl.BlockSpec((bt, R, C), lambda g: (g, 0, 0))],
                out_specs=pl.BlockSpec((bt, R, C), lambda g: (g, 0, 0)),
            ),
            compiler_params=pltpu.CompilerParams(
                dimension_semantics=("parallel",),
                vmem_limit_bytes=int(min(max(vmem_needed, 32 << 20), budget)),
            ),
        )(xv)

    return out_v.reshape(B, M, T)


# --------------------------------------------------------------------------- #
# Reference + self-test.                                                       #
# --------------------------------------------------------------------------- #
def _reference(x):
    xf = x.astype(jnp.float32)
    mean = jnp.mean(xf, axis=(1, 2), keepdims=True)
    std = jnp.std(xf, axis=(1, 2), keepdims=True, ddof=1)
    xstd = (xf - mean) / (std + EPS)
    mn = jnp.min(xstd, axis=(1, 2), keepdims=True)
    mx = jnp.max(xstd, axis=(1, 2), keepdims=True)
    rng = mx - mn
    fix = rng > EPS
    return jnp.where(fix, (xstd - mn) / jnp.where(fix, rng, 1.0), 0.0)


if __name__ == "__main__":
    key = jax.random.PRNGKey(0)
    k1, k2, k3, k4 = jax.random.split(key, 4)

    # (1) lane-dense T (multiple of 128), f32 — whole-sample path, 2-step grid
    x1 = jax.random.normal(k1, (2, 16, 128), dtype=jnp.float32) * 3.0 + 1.5
    o1 = jax.block_until_ready(normalize_mel_spec(x1))
    assert o1.shape == x1.shape and o1.dtype == x1.dtype
    assert jnp.allclose(o1, _reference(x1), atol=1e-4, rtol=1e-4), "mismatch (aligned T)"
    assert float(jnp.min(o1)) >= -1e-5 and float(jnp.max(o1)) <= 1.0 + 1e-5

    # (2) T not a multiple of 128 but M*T is -> lane-dense repacked view
    x2 = jax.random.normal(k2, (4, 24, 160), dtype=jnp.float32) * 0.7 - 2.0
    o2 = jax.block_until_ready(normalize_mel_spec(x2))
    assert jnp.allclose(o2, _reference(x2), atol=1e-4, rtol=1e-4), "mismatch (repacked)"

    # (3) bf16 stays bf16 on the HBM path, widened only in-kernel; dB-like offset
    x3 = (jax.random.normal(k3, (2, 16, 128), dtype=jnp.float32) * 2.0 - 60.0).astype(jnp.bfloat16)
    o3 = jax.block_until_ready(normalize_mel_spec(x3))
    r3 = _reference(x3).astype(jnp.bfloat16)
    assert o3.dtype == jnp.bfloat16
    assert jnp.allclose(o3.astype(jnp.float32), r3.astype(jnp.float32), atol=2e-2, rtol=2e-2)

    # (4) ragged M*T (no 128 divisor) — full-block fallback with masked tail stores
    x4 = jax.random.normal(k4, (2, 7, 33), dtype=jnp.float32) * 5.0
    o4 = jax.block_until_ready(normalize_mel_spec(x4))
    assert jnp.allclose(o4, _reference(x4), atol=1e-4, rtol=1e-4), "mismatch (ragged)"

    # (5) force the chunked two-pass (long-audio / v7x VMEM) path on a small example
    x5 = jax.random.normal(k1, (2, 16, 1024), dtype=jnp.float32) - 60.0
    o5 = jax.block_until_ready(
        normalize_mel_spec(x5, target_block_bytes=32 * 1024, force_two_pass=True))
    assert jnp.allclose(o5, _reference(x5), atol=1e-4, rtol=1e-4), "mismatch (two-pass)"

    print("KERNEL_OK")
</pallas_src>

<mosaic_0001>
module attributes {stable_mosaic.version = 11 : i64} {
  func.func @_normalize_block_kernel(%arg0: i32, %arg1: memref<1x16x128xf32, #tpu.memory_space<vmem>>, %arg2: memref<1x16x128xf32, #tpu.memory_space<vmem>>) attributes {dimension_semantics = [#tpu.dimension_semantics<parallel>], iteration_bounds = array<i64: 2>, scalar_prefetch = 0 : i64, scratch_operands = 0 : i64, tpu.core_type = #tpu.core_type<tc>, window_params = [{transform_indices = @transform_0, window_bounds = array<i64: 1, 16, 128>}, {transform_indices = @transform_1, window_bounds = array<i64: 1, 16, 128>}]} {
    %c0 = arith.constant 0 : index
    %c0_0 = arith.constant 0 : index
    %c0_1 = arith.constant 0 : index
    %0 = vector.load %arg1[%c0, %c0_0, %c0_1] : memref<1x16x128xf32, #tpu.memory_space<vmem>>, vector<1x16x128xf32>
    %1 = vector.extract_strided_slice %0 {offsets = [0, 0, 0], sizes = [1, 1, 1], strides = [1, 1, 1]} : vector<1x16x128xf32> to vector<1x1x1xf32>
    %2 = vector.broadcast %1 : vector<1x1x1xf32> to vector<1x16x128xf32>
    %3 = arith.subf %0, %2 : vector<1x16x128xf32>
    %cst = arith.constant dense<0.000000e+00> : vector<1x16xf32>
    %4 = vector.multi_reduction <add>, %3, %cst [2] : vector<1x16x128xf32> to vector<1x16xf32>
    %5 = vector.shape_cast %4 : vector<1x16xf32> to vector<1x16x1xf32>
    %cst_2 = arith.constant dense<0.000000e+00> : vector<1x1xf32>
    %6 = vector.multi_reduction <add>, %5, %cst_2 [1] : vector<1x16x1xf32> to vector<1x1xf32>
    %7 = vector.shape_cast %6 : vector<1x1xf32> to vector<1x1x1xf32>
    %8 = arith.mulf %3, %3 : vector<1x16x128xf32>
    %cst_3 = arith.constant dense<0.000000e+00> : vector<1x16xf32>
    %9 = vector.multi_reduction <add>, %8, %cst_3 [2] : vector<1x16x128xf32> to vector<1x16xf32>
    %10 = vector.shape_cast %9 : vector<1x16xf32> to vector<1x16x1xf32>
    %cst_4 = arith.constant dense<0.000000e+00> : vector<1x1xf32>
    %11 = vector.multi_reduction <add>, %10, %cst_4 [1] : vector<1x16x1xf32> to vector<1x1xf32>
    %12 = vector.shape_cast %11 : vector<1x1xf32> to vector<1x1x1xf32>
    %cst_5 = arith.constant dense<0x7F800000> : vector<1x16xf32>
    %13 = vector.multi_reduction <minimumf>, %0, %cst_5 [2] : vector<1x16x128xf32> to vector<1x16xf32>
    %14 = vector.shape_cast %13 : vector<1x16xf32> to vector<1x16x1xf32>
    %cst_6 = arith.constant dense<0x7F800000> : vector<1x1xf32>
    %15 = vector.multi_reduction <minimumf>, %14, %cst_6 [1] : vector<1x16x1xf32> to vector<1x1xf32>
    %16 = vector.shape_cast %15 : vector<1x1xf32> to vector<1x1x1xf32>
    %cst_7 = arith.constant dense<0xFF800000> : vector<1x16xf32>
    %17 = vector.multi_reduction <maximumf>, %0, %cst_7 [2] : vector<1x16x128xf32> to vector<1x16xf32>
    %18 = vector.shape_cast %17 : vector<1x16xf32> to vector<1x16x1xf32>
    %cst_8 = arith.constant dense<0xFF800000> : vector<1x1xf32>
    %19 = vector.multi_reduction <maximumf>, %18, %cst_8 [1] : vector<1x16x1xf32> to vector<1x1xf32>
    %20 = vector.shape_cast %19 : vector<1x1xf32> to vector<1x1x1xf32>
    %21 = arith.mulf %7, %7 : vector<1x1x1xf32>
    %cst_9 = arith.constant 4.8828125E-4 : f32
    %22 = vector.broadcast %cst_9 : f32 to vector<1x1x1xf32>
    %23 = arith.mulf %21, %22 : vector<1x1x1xf32>
    %24 = arith.subf %12, %23 : vector<1x1x1xf32>
    %cst_10 = arith.constant 4.88519785E-4 : f32
    %25 = vector.broadcast %cst_10 : f32 to vector<1x1x1xf32>
    %26 = arith.mulf %24, %25 : vector<1x1x1xf32>
    %cst_11 = arith.constant 0.000000e+00 : f32
    %27 = vector.broadcast %cst_11 : f32 to vector<1x1x1xf32>
    %28 = arith.maximumf %26, %27 : vector<1x1x1xf32>
    %29 = math.sqrt %28 : vector<1x1x1xf32>
    %30 = arith.subf %20, %16 : vector<1x1x1xf32>
    %cst_12 = arith.constant 9.99999997E-7 : f32
    %31 = vector.broadcast %cst_12 : f32 to vector<1x1x1xf32>
    %32 = arith.addf %29, %31 : vector<1x1x1xf32>
    %cst_13 = arith.constant 9.99999997E-7 : f32
    %33 = vector.broadcast %cst_13 : f32 to vector<1x1x1xf32>
    %34 = arith.mulf %33, %32 : vector<1x1x1xf32>
    %35 = arith.cmpf ogt, %30, %34 : vector<1x1x1xf32>
    %cst_14 = arith.constant 1.000000e+00 : f32
    %cst_15 = arith.constant 0.000000e+00 : f32
    %36 = vector.broadcast %cst_14 : f32 to vector<1x1x1xf32>
    %37 = vector.broadcast %cst_15 : f32 to vector<1x1x1xf32>
    %38 = arith.select %35, %36, %37 : vector<1x1x1xi1>, vector<1x1x1xf32>
    %cst_16 = arith.constant 1.000000e+00 : f32
    %39 = vector.broadcast %cst_16 : f32 to vector<1x1x1xf32>
    %40 = arith.select %35, %30, %39 : vector<1x1x1xi1>, vector<1x1x1xf32>
    %41 = arith.divf %38, %40 : vector<1x1x1xf32>
    %42 = vector.broadcast %16 : vector<1x1x1xf32> to vector<1x16x128xf32>
    %43 = arith.subf %0, %42 : vector<1x16x128xf32>
    %44 = vector.broadcast %41 : vector<1x1x1xf32> to vector<1x16x128xf32>
    %45 = arith.mulf %43, %44 : vector<1x16x128xf32>
    %c0_17 = arith.constant 0 : index
    %c0_18 = arith.constant 0 : index
    %c0_19 = arith.constant 0 : index
    %46 = vector.load %arg2[%c0_17, %c0_18, %c0_19] : memref<1x16x128xf32, #tpu.memory_space<vmem>>, vector<1x16x128xf32>
    tpu.vector_store %arg2[%c0_17, %c0_18, %c0_19], %45 {strides = array<i32>} : memref<1x16x128xf32, #tpu.memory_space<vmem>>, vector<1x16x128xf32>,
    return
  }
  func.func @transform_0(%arg0: i32) -> (i32, i32, i32) {
    %c0_i32 = arith.constant 0 : i32
    %c0_i32_0 = arith.constant 0 : i32
    %c0_i32_1 = arith.constant 0 : i32
    return %arg0, %c0_i32, %c0_i32_0 : i32, i32, i32
  }
  func.func @transform_1(%arg0: i32) -> (i32, i32, i32) {
    %c0_i32 = arith.constant 0 : i32
    %c0_i32_0 = arith.constant 0 : i32
    %c0_i32_1 = arith.constant 0 : i32
    return %arg0, %c0_i32, %c0_i32_0 : i32, i32, i32
  }
}

</mosaic_0001>

<llo_original>
// kernel: tpu_custom_call.1
$region0: #{tpu_custom_call.1}
  #allocation0 [shape = 'u32[]', space=smem, size = 0x4, offset = 0x4, fixed_abs, tag = 'smem constant byte address 0x4 - core index']
  #allocation1 [shape = 'u32[144,128]{1,0:T(1,128)}', space=vmem, size = 0x12000, scoped, tag = 'internal scratch']
  %s0 = inlined_call_operand.hbm [shape: f32[2,16,128], index: 0, kind: input, shape index: {}]
  %s1 = inlined_call_operand.hbm [shape: f32[2,16,128], index: 1, kind: output, shape index: {}]
  %s2 = sld [smem:[#allocation0]]
  $region41: #{tpu_custom_call.1} parent=0
    _
  %s4 = ssub.s32 1, %s2
  %s5 = scalar_select 0, %s4, %s2
  $region1: #{tpu_custom_call.1} parent=0
    #allocation2 [shape = 'u8[16384]{0}', space=vmem, size = 0x4000, scoped, tag = 'input window, operand 0']
    #allocation3 [shape = 's32[2]{0}', space=sflag, size = 0x8, scoped, tag = 'scoped memory for tpu_custom_call.1']
    #allocation4 [shape = 's32[2]{0}', space=sflag, size = 0x8, scoped, tag = 'scoped memory for tpu_custom_call.1']
    #allocation5 [shape = 'u8[16384]{0}', space=vmem, size = 0x4000, scoped, tag = 'output window, operand 0']
    %6 = vsyncpa [#allocation3], 0
    %s7 = scalar_lea.sflag [#allocation3], 1
    %8 = vsyncpa %s7, 0
    %9 = vsyncpa [#allocation4], 0
    %s10 = scalar_lea.sflag [#allocation4], 1
    %11 = vsyncpa %s10, 0
    loop: start=0, step=1, limit=4
    $region2: #{tpu_custom_call.1} parent=1 // loop_pre_header
      _
    $region3: #{tpu_custom_call.1} parent=1 // loop_header
      %s13 = sphi 0, %s17
      %p14 = scmp.ge.s32.totalorder %s13, 4
      %s23 = sphi 0, %s25
      %s26 = sphi 0, %s23
      %s27 = sphi 0, %s26
      %s43 = sphi 0, %s27
      %s49 = sphi 0, %s51
      %s52 = sphi 0, %s49
      %s53 = sphi 0, %s52
      %s69 = sphi 0, %s53
    $region4: #{tpu_custom_call.1} parent=1 // loop_header_branch
      %16 = sbr.rel (%p14) target = $region8
    $region5: #{tpu_custom_call.1} parent=1 // loop_body
      %s18 = ssub.s32 %s13, 1
      %s19 = ssub.s32 %s13, 2
      %s20 = sadd.s32 %s13, 1
      %s21 = ssub.s32 %s13, %s20
      %p22 = scmp.eq.s32.totalorder %s21, 0
      %s24 = sadd.s32 %s23, 1
      %s25 = scalar_select %p22, %s23, %s24
      %p28 = pneg %p22
      %p29 = scmp.eq.s32.totalorder %s13, 1
      %p30 = por %p28, %p29
      %p31 = scmp.ne.s32.totalorder %s23, %s26
      %p32 = scmp.eq.s32.totalorder %s13, 0
      %p33 = por %p31, %p32
      %p34 = scmp.ne.s32.totalorder %s23, %s26
      %p35 = scmp.eq.s32.totalorder %s18, 1
      %p36 = por %p34, %p35
      %p37 = scmp.ne.s32.totalorder %s26, %s27
      %p38 = scmp.eq.s32.totalorder %s18, 0
      %p39 = por %p37, %p38
      %p40 = scmp.ne.s32.totalorder %s26, %s27
      %p41 = scmp.eq.s32.totalorder %s19, 1
      %p42 = por %p40, %p41
      %p44 = scmp.ne.s32.totalorder %s27, %s43
      %p45 = scmp.eq.s32.totalorder %s19, 0
      %p46 = por %p44, %p45
      %s47 = ssub.s32 %s13, %s20
      %p48 = scmp.eq.s32.totalorder %s47, 0
      %s50 = sadd.s32 %s49, 1
      %s51 = scalar_select %p48, %s49, %s50
      %p54 = pneg %p48
      %p55 = scmp.eq.s32.totalorder %s13, 1
      %p56 = por %p54, %p55
      %p57 = scmp.ne.s32.totalorder %s49, %s52
      %p58 = scmp.eq.s32.totalorder %s13, 0
      %p59 = por %p57, %p58
      %p60 = scmp.ne.s32.totalorder %s49, %s52
      %p61 = scmp.eq.s32.totalorder %s18, 1
      %p62 = por %p60, %p61
      %p63 = scmp.ne.s32.totalorder %s52, %s53
      %p64 = scmp.eq.s32.totalorder %s18, 0
      %p65 = por %p63, %p64
      %p66 = scmp.ne.s32.totalorder %s52, %s53
      %p67 = scmp.eq.s32.totalorder %s19, 1
      %p68 = por %p66, %p67
      %p70 = scmp.ne.s32.totalorder %s53, %s69
      %p71 = scmp.eq.s32.totalorder %s19, 0
      %p72 = por %p70, %p71
      %p73 = scmp.le.s32.totalorder 1, %s13
      %p74 = scmp.lt.s32.totalorder %s13, 3
      %p75 = pnand %p73, %p74
      %p76 = pneg %p75
      // Predicated region
      $region9: #{tpu_custom_call.1} parent=5 // pred_check
        _
      $region10: #{tpu_custom_call.1} parent=5 // pred_check_branch
        %78 = sbr.rel (%p75) target = $region12
      $region11: #{tpu_custom_call.1} parent=5 // pred_region
        %s79 = ssub.s32 %s13, 1
      $region12: #{tpu_custom_call.1} parent=5 // pred_fallthru
        _
      %p80 = scmp.lt.s32.totalorder %s13, 2
      // Predicated region
      $region13: #{tpu_custom_call.1} parent=5 // pred_check
        %p81 = pneg %p80
      $region14: #{tpu_custom_call.1} parent=5 // pred_check_branch
        %83 = sbr.rel (%p81) target = $region16
      $region15: #{tpu_custom_call.1} parent=5 // pred_region
        // Predicated region
        $region17: #{tpu_custom_call.1} parent=15 // pred_check
          %p84 = pneg %p33
        $region18: #{tpu_custom_call.1} parent=15 // pred_check_branch
          %86 = sbr.rel (%p84) target = $region20
        $region19: #{tpu_custom_call.1} parent=15 // pred_region
          %s87 = sand.u32 %s23, 1
          %s88 = scalar_lea.sflag [#allocation3], %s87
          %s89 = sand.u32 %s23, 1
          %s90 = smul.addr %s89, 16
          %s91 = scalar_lea.vmem [#allocation2], %s90
          %s93 = ssub.s32 256, 256
          %94 = vsyncadd %s88, %s93
          %s95 = smul.addr %s13, 2
          %s96 = smul.addr %s95, 128
          %s97 = scalar_lea.hbm %s0, %s96
          %s98 = sshll.u32 %s91, 4
          %s99 = int_to_ptr.vmem [resolvable:$true] %s98
          %104 = dma.hbm_to_vmem [thread:$0]  %s97, 256, %s99, %s88, 128, 128, 8
        $region20: #{tpu_custom_call.1} parent=15 // pred_fallthru
          _
      $region16: #{tpu_custom_call.1} parent=5 // pred_fallthru
        _
      %p105 = scmp.le.s32.totalorder 1, %s13
      %p106 = scmp.lt.s32.totalorder %s13, 3
      %p107 = pnand %p105, %p106
      %p108 = pneg %p107
      // Predicated region
      $region21: #{tpu_custom_call.1} parent=5 // pred_check
        _
      $region22: #{tpu_custom_call.1} parent=5 // pred_check_branch
        %110 = sbr.rel (%p107) target = $region24
      $region23: #{tpu_custom_call.1} parent=5 // pred_region
        %s111 = ssub.s32 %s13, 1
        %s112 = sand.u32 %s26, 1
        %s113 = scalar_lea.sflag [#allocation3], %s112
        %s114 = sand.u32 %s26, 1
        %s115 = smul.addr %s114, 16
        %s116 = scalar_lea.vmem [#allocation2], %s115
        // Predicated region
        $region25: #{tpu_custom_call.1} parent=23 // pred_check
          %p117 = pneg %p39
        $region26: #{tpu_custom_call.1} parent=23 // pred_check_branch
          %119 = sbr.rel (%p117) target = $region28
        $region27: #{tpu_custom_call.1} parent=23 // pred_region
          %120 = dma.done %s113, 256
        $region28: #{tpu_custom_call.1} parent=23 // pred_fallthru
          _
        %s121 = sand.u32 %s26, 1
        %s122 = scalar_lea.sflag [#allocation3], %s121
        %s123 = sand.u32 %s26, 1
        %s124 = smul.addr %s123, 16
        %s125 = scalar_lea.vmem [#allocation2], %s124
        %p126 = pneg %p39
        %p127 = pneg %p36
        %p128 = pneg %p65
        %p129 = pneg %p62
        %s130 = sand.u32 %s52, 1
        %s131 = scalar_lea.sflag [#allocation4], %s130
        %s132 = sand.u32 %s52, 1
        %s133 = smul.addr %s132, 16
        %s134 = scalar_lea.vmem [#allocation5], %s133
        %v135 = vld [vmem:[%s116] sm:$0xff]
        %v136 = vld [vmem:[%s116 + $0x8] sm:$0xff]
        %s138 = vtos %v135
        %v139 = vstv %s138
        %v141 = vsub.f32 %v135, %v139
        %v142 = vsub.f32 %v136, %v139
        %143 = vadd.xlane.f32.xlu0 %v141
        %v144 = vpop.xlane.xlu0 %143
        %145 = vadd.xlane.f32.xlu0 %v142
        %v146 = vpop.xlane.xlu0 %145
        %v147 = vadd.f32 %v144, %v146
        %v148 = vrot.slane %v147, 4
        %v149 = vadd.f32 %v147, %v148
        %v150 = vrot.slane %v149, 2
        %v151 = vadd.f32 %v149, %v150
        %v152 = vrot.slane %v151, 1
        %v153 = vadd.f32 %v151, %v152
        %v154 = vmul.f32 %v141, %v141
        %v155 = vmul.f32 %v142, %v142
        %156 = vadd.xlane.f32.xlu0 %v154
        %v157 = vpop.xlane.xlu0 %156
        %158 = vadd.xlane.f32.xlu0 %v155
        %v159 = vpop.xlane.xlu0 %158
        %v160 = vadd.f32 %v157, %v159
        %v161 = vrot.slane %v160, 4
        %v162 = vadd.f32 %v160, %v161
        %v163 = vrot.slane %v162, 2
        %v164 = vadd.f32 %v162, %v163
        %v165 = vrot.slane %v164, 1
        %v166 = vadd.f32 %v164, %v165
        %167 = vmin.xlane.f32.xlu0 %v135
        %v168 = vpop.xlane.xlu0 %167
        %169 = vmin.xlane.f32.xlu0 %v136
        %v170 = vpop.xlane.xlu0 %169
        %v171 = vmin.f32 %v168, %v170
        %v172 = vrot.slane %v171, 4
        %v173 = vmin.f32 %v171, %v172
        %v174 = vrot.slane %v173, 2
        %v175 = vmin.f32 %v173, %v174
        %v176 = vrot.slane %v175, 1
        %v177 = vmin.f32 %v175, %v176
        %178 = vmax.xlane.f32.xlu0 %v135
        %v179 = vpop.xlane.xlu0 %178
        %180 = vmax.xlane.f32.xlu0 %v136
        %v181 = vpop.xlane.xlu0 %180
        %v182 = vmax.f32 %v179, %v181
        %v183 = vrot.slane %v182, 4
        %v184 = vmax.f32 %v182, %v183
        %v185 = vrot.slane %v184, 2
        %v186 = vmax.f32 %v184, %v185
        %v187 = vrot.slane %v186, 1
        %v188 = vmax.f32 %v186, %v187
        %v189 = vmul.f32 %v153, %v153
        %v190 = vmul.f32 %v189, 0.00048828125
        %v191 = vsub.f32 %v166, %v190
        %v192 = vmul.f32 %v191, 0.0004885198
        %v193 = vmax.f32 %v192, 0.0
        %v194 = vrsqrt.pop %v193
        %v195 = vmul.f32 %v193, %v194
        %vm196 = vcmp.eq.f32.partialorder %v193, inf
        %v197 = vsel %vm196, %v193, %v195
        %vm198 = vcmp.eq.f32.partialorder %v193, 0.0
        %v199 = vand.u32 %v193, 2147483648
        %v200 = vsel %vm198, %v199, %v197
        %v201 = vsub.f32 %v188, %v177
        %v202 = vadd.f32 %v200, 1e-06
        %v203 = vmul.f32 %v202, 1e-06
        %vm204 = vcmp.gt.f32.partialorder %v201, %v203
        %v205 = vsel %vm204, 1.0, 0.0
        %v206 = vsel %vm204, %v201, 1.0
        %v207 = vrcp.pop %v206
        %v208 = vmul.f32 %v205, %v207
        %v209 = vsub.f32 %v135, %v177
        %v210 = vsub.f32 %v136, %v177
        %v211 = vmul.f32 %v209, %v208
        %v212 = vmul.f32 %v210, %v208
        %213 = vst [vmem:[%s134] sm:$0xff] %v211
        %214 = vst [vmem:[%s134 + $0x8] sm:$0xff] %v212
        %s215 = sand.u32 %s52, 1
        %s216 = scalar_lea.sflag [#allocation4], %s215
        %s217 = sand.u32 %s52, 1
        %s218 = smul.addr %s217, 16
        %s219 = scalar_lea.vmem [#allocation5], %s218
        // Predicated region
        $region29: #{tpu_custom_call.1} parent=23 // pred_check
          %p220 = pneg %p62
        $region30: #{tpu_custom_call.1} parent=23 // pred_check_branch
          %222 = sbr.rel (%p220) target = $region32
        $region31: #{tpu_custom_call.1} parent=23 // pred_region
          %s224 = ssub.s32 256, 256
          %225 = vsyncadd %s216, %s224
          %s226 = smul.addr %s18, 2
          %s227 = smul.addr %s226, 128
          %s228 = scalar_lea.hbm %s1, %s227
          %s229 = sshll.u32 %s219, 4
          %s230 = int_to_ptr.vmem [resolvable:$true] %s229
          %235 = dma.vmem_to_hbm [thread:$0]  %s230, 256, %s228, %s216, 128, 128, 8
        $region32: #{tpu_custom_call.1} parent=23 // pred_fallthru
          _
      $region24: #{tpu_custom_call.1} parent=5 // pred_fallthru
        _
      %p236 = scmp.le.s32.totalorder 2, %s13
      // Predicated region
      $region33: #{tpu_custom_call.1} parent=5 // pred_check
        %p237 = pneg %p236
      $region34: #{tpu_custom_call.1} parent=5 // pred_check_branch
        %239 = sbr.rel (%p237) target = $region36
      $region35: #{tpu_custom_call.1} parent=5 // pred_region
        %s240 = ssub.s32 %s13, 2
        // Predicated region
        $region37: #{tpu_custom_call.1} parent=35 // pred_check
          %p241 = pneg %p68
        $region38: #{tpu_custom_call.1} parent=35 // pred_check_branch
          %243 = sbr.rel (%p241) target = $region40
        $region39: #{tpu_custom_call.1} parent=35 // pred_region
          %s244 = sand.u32 %s53, 1
          %s245 = scalar_lea.sflag [#allocation4], %s244
          %s246 = sand.u32 %s53, 1
          %s247 = smul.addr %s246, 16
          %s248 = scalar_lea.vmem [#allocation5], %s247
          %249 = dma.done %s245, 256
        $region40: #{tpu_custom_call.1} parent=35 // pred_fallthru
          _
      $region36: #{tpu_custom_call.1} parent=5 // pred_fallthru
        _
    $region6: #{tpu_custom_call.1} parent=1 // loop_footer
      %s17 = sadd.s32 1, %s13
    $region7: #{tpu_custom_call.1} parent=1 // loop_footer_branch
      %12 = sbr.rel target = $region3
    $region8: #{tpu_custom_call.1} parent=1 // loop_exit
      _
    %250 = vsyncpa [#allocation3], 1
    %s251 = scalar_lea.sflag [#allocation3], 1
    %252 = vsyncpa %s251, 1
    %253 = vsyncpa [#allocation4], 1
    %s254 = scalar_lea.sflag [#allocation4], 1
    %255 = vsyncpa %s254, 1

</llo_original>
